<compile_context>
chip_gen: v5e
topology: v5e:2x2
jax: 0.10.0
libtpu: 0.0.40
codegen_flags: <defaults>
</compile_context>

<pallas_src>
import functools

import jax
import jax.numpy as jnp
from jax.experimental import pallas as pl
from jax.experimental.pallas import tpu as pltpu


def _zpool_kernel(x_ref, o_ref, *, inv_c):
    # x_ref: (C, THW) tile (batch dim squeezed);  o_ref: (2, THW) tile
    x = x_ref[...]
    mx = jnp.max(x, axis=0, keepdims=True)                        # (1, THW), input dtype (exact)
    sm = jnp.sum(x, axis=0, dtype=jnp.float32, keepdims=True)     # (1, THW), f32 accumulate
    o_ref[0:1, :] = mx.astype(o_ref.dtype)
    o_ref[1:2, :] = (sm * inv_c).astype(o_ref.dtype)


def _round_up(v, m):
    return ((v + m - 1) // m) * m


def _choose_tile(hw, c, n, itemsize):
    """Lane tile size.

    - Double-buffered footprint (input block C*thw + output block 2*thw, x2 buffers)
      kept under ~16 MiB: fits v7x's 64 MiB VMEM with headroom, big enough to hit
      the HBM roofline on v5e/v6e (multi-MiB DMA blocks, few grid steps).
    - Multiple of 128 lanes when tiling; if the tile covers the whole HW row we
      return the exact HW (full-extent block, no alignment requirement).
    - If N == 1, split HW into at least 2 tiles so v7x's two TensorCores both
      get programs to run.
    """
    budget = 16 * 1024 * 1024
    max_thw = budget // (2 * (c + 2) * itemsize)
    thw = max(128, (max_thw // 128) * 128)

    if n == 1 and hw > 128:
        half128 = max(128, _round_up(-(-hw // 2), 128))
        thw = min(thw, half128)

    if thw >= hw:
        return hw          # single full-extent block per (n) row
    return thw             # multiple of 128; ragged final block handled by Pallas


def z_pool(x):
    """x: (N, C, H, W) -> (N, 2, H, W). out[:,0]=max over C, out[:,1]=mean over C."""
    N, C, H, W = x.shape
    HW = H * W
    itemsize = jnp.dtype(x.dtype).itemsize

    thw = _choose_tile(HW, C, N, itemsize)
    grid = (N, pl.cdiv(HW, thw))

    xf = x.reshape(N, C, HW)    # contiguous reshape, no HBM traffic

    out = pl.pallas_call(
        functools.partial(_zpool_kernel, inv_c=1.0 / C),
        out_shape=jax.ShapeDtypeStruct((N, 2, HW), x.dtype),
        grid_spec=pltpu.PrefetchScalarGridSpec(
            num_scalar_prefetch=0,
            grid=grid,
            in_specs=[
                pl.BlockSpec((pl.Squeezed(), C, thw), lambda n, t: (n, 0, t)),
            ],
            out_specs=pl.BlockSpec((pl.Squeezed(), 2, thw), lambda n, t: (n, 0, t)),
        ),
        compiler_params=pltpu.CompilerParams(
            dimension_semantics=("parallel", "parallel"),
            vmem_limit_bytes=32 * 1024 * 1024,
        ),
    )(xf)

    return out.reshape(N, 2, H, W)


def _ref(x):
    return jnp.concatenate(
        [jnp.max(x, axis=1, keepdims=True), jnp.mean(x, axis=1, keepdims=True)],
        axis=1,
    )


if __name__ == "__main__":
    key = jax.random.PRNGKey(0)

    # Case 1: H*W a multiple of 128, fits in a single tile.
    N, C, H, W = 2, 4, 16, 16
    x = jax.random.normal(key, (N, C, H, W), dtype=jnp.float32)
    out = jax.block_until_ready(z_pool(x))
    assert out.shape == (N, 2, H, W), out.shape
    assert jnp.allclose(out, _ref(x), atol=1e-5, rtol=1e-5)

    # Case 2: H*W < 128 and not a multiple of 128 (full-extent block path).
    N2, C2, H2, W2 = 2, 3, 10, 12
    x2 = jax.random.normal(jax.random.PRNGKey(1), (N2, C2, H2, W2), dtype=jnp.float32)
    out2 = jax.block_until_ready(z_pool(x2))
    assert out2.shape == (N2, 2, H2, W2), out2.shape
    assert jnp.allclose(out2, _ref(x2), atol=1e-5, rtol=1e-5)

    # Case 3: N == 1 with H*W not a multiple of the tile size
    # (exercises the two-tile megacore split + ragged final block, no padding).
    N3, C3, H3, W3 = 1, 4, 18, 20
    x3 = jax.random.normal(jax.random.PRNGKey(2), (N3, C3, H3, W3), dtype=jnp.float32)
    out3 = jax.block_until_ready(z_pool(x3))
    assert out3.shape == (N3, 2, H3, W3), out3.shape
    assert jnp.allclose(out3, _ref(x3), atol=1e-5, rtol=1e-5)

    print("KERNEL_OK")
</pallas_src>

<mosaic_0001>
module attributes {stable_mosaic.version = 11 : i64} {
  func.func @_zpool_kernel(%arg0: i32, %arg1: i32, %arg2: memref<1x4x256xf32, #tpu.memory_space<vmem>>, %arg3: memref<1x2x256xf32, #tpu.memory_space<vmem>>) attributes {dimension_semantics = [#tpu.dimension_semantics<parallel>, #tpu.dimension_semantics<parallel>], iteration_bounds = array<i64: 2, 1>, scalar_prefetch = 0 : i64, scratch_operands = 0 : i64, tpu.core_type = #tpu.core_type<tc>, window_params = [{transform_indices = @transform_0, window_bounds = array<i64: 1, 4, 256>}, {transform_indices = @transform_1, window_bounds = array<i64: 1, 2, 256>}]} {
    %c0 = arith.constant 0 : index
    %c0_0 = arith.constant 0 : index
    %c0_1 = arith.constant 0 : index
    %0 = vector.load %arg2[%c0, %c0_0, %c0_1] : memref<1x4x256xf32, #tpu.memory_space<vmem>>, vector<1x4x256xf32>
    %1 = vector.shape_cast %0 : vector<1x4x256xf32> to vector<4x256xf32>
    %cst = arith.constant dense<0xFF800000> : vector<256xf32>
    %2 = vector.multi_reduction <maximumf>, %1, %cst [0] : vector<4x256xf32> to vector<256xf32>
    %3 = vector.shape_cast %2 : vector<256xf32> to vector<1x256xf32>
    %cst_2 = arith.constant dense<0.000000e+00> : vector<256xf32>
    %4 = vector.multi_reduction <add>, %1, %cst_2 [0] : vector<4x256xf32> to vector<256xf32>
    %5 = vector.shape_cast %4 : vector<256xf32> to vector<1x256xf32>
    %c0_3 = arith.constant 0 : index
    %c0_4 = arith.constant 0 : index
    %c0_5 = arith.constant 0 : index
    %6 = vector.load %arg3[%c0_3, %c0_4, %c0_5] : memref<1x2x256xf32, #tpu.memory_space<vmem>>, vector<1x1x256xf32>
    %7 = vector.shape_cast %6 : vector<1x1x256xf32> to vector<1x256xf32>
    %8 = vector.shape_cast %3 : vector<1x256xf32> to vector<1x1x256xf32>
    tpu.vector_store %arg3[%c0_3, %c0_4, %c0_5], %8 {strides = array<i32>} : memref<1x2x256xf32, #tpu.memory_space<vmem>>, vector<1x1x256xf32>,
    %cst_6 = arith.constant 2.500000e-01 : f32
    %9 = vector.broadcast %cst_6 : f32 to vector<1x256xf32>
    %10 = arith.mulf %5, %9 : vector<1x256xf32>
    %c0_7 = arith.constant 0 : index
    %c1 = arith.constant 1 : index
    %c0_8 = arith.constant 0 : index
    %11 = vector.load %arg3[%c0_7, %c1, %c0_8] : memref<1x2x256xf32, #tpu.memory_space<vmem>>, vector<1x1x256xf32>
    %12 = vector.shape_cast %11 : vector<1x1x256xf32> to vector<1x256xf32>
    %13 = vector.shape_cast %10 : vector<1x256xf32> to vector<1x1x256xf32>
    tpu.vector_store %arg3[%c0_7, %c1, %c0_8], %13 {strides = array<i32>} : memref<1x2x256xf32, #tpu.memory_space<vmem>>, vector<1x1x256xf32>,
    return
  }
  func.func @transform_0(%arg0: i32, %arg1: i32) -> (i32, i32, i32) {
    %c0_i32 = arith.constant 0 : i32
    %c0_i32_0 = arith.constant 0 : i32
    return %arg0, %c0_i32, %arg1 : i32, i32, i32
  }
  func.func @transform_1(%arg0: i32, %arg1: i32) -> (i32, i32, i32) {
    %c0_i32 = arith.constant 0 : i32
    %c0_i32_0 = arith.constant 0 : i32
    return %arg0, %c0_i32, %arg1 : i32, i32, i32
  }
}

</mosaic_0001>

<llo_original>
// kernel: tpu_custom_call.1
$region0: #{tpu_custom_call.1}
  #allocation0 [shape = 'u32[]', space=smem, size = 0x4, offset = 0x4, fixed_abs, tag = 'smem constant byte address 0x4 - core index']
  #allocation1 [shape = 'u32[72,128]{1,0:T(1,128)}', space=vmem, size = 0x9000, scoped, tag = 'internal scratch']
  %s0 = inlined_call_operand.hbm [shape: f32[2,4,256], index: 0, kind: input, shape index: {}]
  %s1 = inlined_call_operand.hbm [shape: f32[2,2,256], index: 1, kind: output, shape index: {}]
  %s2 = sld [smem:[#allocation0]]
  $region41: #{tpu_custom_call.1} parent=0
    _
  %s4 = ssub.s32 1, %s2
  %s5 = scalar_select 0, %s4, %s2
  $region1: #{tpu_custom_call.1} parent=0
    #allocation2 [shape = 'u8[8192]{0}', space=vmem, size = 0x2000, scoped, tag = 'input window, operand 0']
    #allocation3 [shape = 's32[2]{0}', space=sflag, size = 0x8, scoped, tag = 'scoped memory for tpu_custom_call.1']
    #allocation4 [shape = 's32[2]{0}', space=sflag, size = 0x8, scoped, tag = 'scoped memory for tpu_custom_call.1']
    #allocation5 [shape = 'u8[4096]{0}', space=vmem, size = 0x1000, scoped, tag = 'output window, operand 0']
    %6 = vsyncpa [#allocation3], 0
    %s7 = scalar_lea.sflag [#allocation3], 1
    %8 = vsyncpa %s7, 0
    %9 = vsyncpa [#allocation4], 0
    %s10 = scalar_lea.sflag [#allocation4], 1
    %11 = vsyncpa %s10, 0
    loop: start=0, step=1, limit=4
    $region2: #{tpu_custom_call.1} parent=1 // loop_pre_header
      _
    $region3: #{tpu_custom_call.1} parent=1 // loop_header
      %s13 = sphi 0, %s17
      %p14 = scmp.ge.s32.totalorder %s13, 4
      %s20 = sphi 0, %s32
      %s21 = sphi 0, %s28
      %s22 = sphi 0, %s20
      %s23 = sphi 0, %s21
      %s24 = sphi 0, %s22
      %s25 = sphi 0, %s23
      %s37 = sphi 0, %s39
      %s40 = sphi 0, %s37
      %s41 = sphi 0, %s40
      %s57 = sphi 0, %s41
      %s65 = sphi 0, %s67
      %s68 = sphi 0, %s65
      %s69 = sphi 0, %s68
      %s85 = sphi 0, %s69
    $region4: #{tpu_custom_call.1} parent=1 // loop_header_branch
      %16 = sbr.rel (%p14) target = $region8
    $region5: #{tpu_custom_call.1} parent=1 // loop_body
      %s18 = ssub.s32 %s13, 1
      %s19 = ssub.s32 %s13, 2
      %s26 = sadd.s32 1, %s21
      %p27 = scmp.ge.s32.totalorder %s26, 1
      %s28 = scalar_select %p27, 0, %s26
      %s29 = sadd.s32 1, %s20
      %s30 = scalar_select %p27, %s29, %s20
      %p31 = scmp.ge.s32.totalorder %s30, 2
      %s32 = scalar_select %p31, 0, %s30
      %s33 = ssub.s32 %s20, %s32
      %s34 = ssub.s32 %s21, %s28
      %s35 = sor.u32 %s33, %s34
      %p36 = scmp.eq.s32.totalorder %s35, 0
      %s38 = sadd.s32 %s37, 1
      %s39 = scalar_select %p36, %s37, %s38
      %p42 = pneg %p36
      %p43 = scmp.eq.s32.totalorder %s13, 1
      %p44 = por %p42, %p43
      %p45 = scmp.ne.s32.totalorder %s37, %s40
      %p46 = scmp.eq.s32.totalorder %s13, 0
      %p47 = por %p45, %p46
      %p48 = scmp.ne.s32.totalorder %s37, %s40
      %p49 = scmp.eq.s32.totalorder %s18, 1
      %p50 = por %p48, %p49
      %p51 = scmp.ne.s32.totalorder %s40, %s41
      %p52 = scmp.eq.s32.totalorder %s18, 0
      %p53 = por %p51, %p52
      %p54 = scmp.ne.s32.totalorder %s40, %s41
      %p55 = scmp.eq.s32.totalorder %s19, 1
      %p56 = por %p54, %p55
      %p58 = scmp.ne.s32.totalorder %s41, %s57
      %p59 = scmp.eq.s32.totalorder %s19, 0
      %p60 = por %p58, %p59
      %s61 = ssub.s32 %s20, %s32
      %s62 = ssub.s32 %s21, %s28
      %s63 = sor.u32 %s61, %s62
      %p64 = scmp.eq.s32.totalorder %s63, 0
      %s66 = sadd.s32 %s65, 1
      %s67 = scalar_select %p64, %s65, %s66
      %p70 = pneg %p64
      %p71 = scmp.eq.s32.totalorder %s13, 1
      %p72 = por %p70, %p71
      %p73 = scmp.ne.s32.totalorder %s65, %s68
      %p74 = scmp.eq.s32.totalorder %s13, 0
      %p75 = por %p73, %p74
      %p76 = scmp.ne.s32.totalorder %s65, %s68
      %p77 = scmp.eq.s32.totalorder %s18, 1
      %p78 = por %p76, %p77
      %p79 = scmp.ne.s32.totalorder %s68, %s69
      %p80 = scmp.eq.s32.totalorder %s18, 0
      %p81 = por %p79, %p80
      %p82 = scmp.ne.s32.totalorder %s68, %s69
      %p83 = scmp.eq.s32.totalorder %s19, 1
      %p84 = por %p82, %p83
      %p86 = scmp.ne.s32.totalorder %s69, %s85
      %p87 = scmp.eq.s32.totalorder %s19, 0
      %p88 = por %p86, %p87
      %p89 = scmp.le.s32.totalorder 1, %s13
      %p90 = scmp.lt.s32.totalorder %s13, 3
      %p91 = pnand %p89, %p90
      %p92 = pneg %p91
      // Predicated region
      $region9: #{tpu_custom_call.1} parent=5 // pred_check
        _
      $region10: #{tpu_custom_call.1} parent=5 // pred_check_branch
        %94 = sbr.rel (%p91) target = $region12
      $region11: #{tpu_custom_call.1} parent=5 // pred_region
        %s95 = ssub.s32 %s13, 1
      $region12: #{tpu_custom_call.1} parent=5 // pred_fallthru
        _
      %p96 = scmp.lt.s32.totalorder %s13, 2
      // Predicated region
      $region13: #{tpu_custom_call.1} parent=5 // pred_check
        %p97 = pneg %p96
      $region14: #{tpu_custom_call.1} parent=5 // pred_check_branch
        %99 = sbr.rel (%p97) target = $region16
      $region15: #{tpu_custom_call.1} parent=5 // pred_region
        // Predicated region
        $region17: #{tpu_custom_call.1} parent=15 // pred_check
          %p100 = pneg %p47
        $region18: #{tpu_custom_call.1} parent=15 // pred_check_branch
          %102 = sbr.rel (%p100) target = $region20
        $region19: #{tpu_custom_call.1} parent=15 // pred_region
          %s103 = sand.u32 %s37, 1
          %s104 = scalar_lea.sflag [#allocation3], %s103
          %s105 = sand.u32 %s37, 1
          %s106 = smul.addr %s105, 8
          %s107 = scalar_lea.vmem [#allocation2], %s106
          %s108 = smul.u32 2, %s21
          %110 = vsyncadd %s104, 0
          %s111 = smul.addr %s20, 2
          %s112 = sadd.s32 %s108, %s111
          %s113 = smul.addr %s112, 4
          %s114 = scalar_lea.hbm %s0, %s113
          %s116 = sshll.u32 %s114, 4
          %s117 = int_to_ptr.hbm [resolvable:$true] %s116
          %s118 = sshll.u32 %s107, 4
          %s119 = int_to_ptr.vmem [resolvable:$true] %s118
          %121 = dma.hbm_to_vmem [thread:$0]  %s117, 128, %s119, %s104
        $region20: #{tpu_custom_call.1} parent=15 // pred_fallthru
          _
      $region16: #{tpu_custom_call.1} parent=5 // pred_fallthru
        _
      %p122 = scmp.le.s32.totalorder 1, %s13
      %p123 = scmp.lt.s32.totalorder %s13, 3
      %p124 = pnand %p122, %p123
      %p125 = pneg %p124
      // Predicated region
      $region21: #{tpu_custom_call.1} parent=5 // pred_check
        _
      $region22: #{tpu_custom_call.1} parent=5 // pred_check_branch
        %127 = sbr.rel (%p124) target = $region24
      $region23: #{tpu_custom_call.1} parent=5 // pred_region
        %s128 = ssub.s32 %s13, 1
        %s129 = sand.u32 %s40, 1
        %s130 = scalar_lea.sflag [#allocation3], %s129
        %s131 = sand.u32 %s40, 1
        %s132 = smul.addr %s131, 8
        %s133 = scalar_lea.vmem [#allocation2], %s132
        // Predicated region
        $region25: #{tpu_custom_call.1} parent=23 // pred_check
          %p134 = pneg %p53
        $region26: #{tpu_custom_call.1} parent=23 // pred_check_branch
          %136 = sbr.rel (%p134) target = $region28
        $region27: #{tpu_custom_call.1} parent=23 // pred_region
          %138 = dma.done %s130, 128
        $region28: #{tpu_custom_call.1} parent=23 // pred_fallthru
          _
        %s139 = sand.u32 %s40, 1
        %s140 = scalar_lea.sflag [#allocation3], %s139
        %s141 = sand.u32 %s40, 1
        %s142 = smul.addr %s141, 8
        %s143 = scalar_lea.vmem [#allocation2], %s142
        %p144 = pneg %p53
        %p145 = pneg %p50
        %p146 = pneg %p81
        %p147 = pneg %p78
        %s148 = sand.u32 %s68, 1
        %s149 = scalar_lea.sflag [#allocation4], %s148
        %s150 = sand.u32 %s68, 1
        %s151 = smul.addr %s150, 4
        %s152 = scalar_lea.vmem [#allocation5], %s151
        %s153 = smul.u32 2, %s23
        %s154 = smul.u32 2, %s23
        %v155 = vld [vmem:[%s133] sm:$0xff]
        %157 = vst [vmem:[#allocation1] ss:$2 sm:$0xff] %v155
        %v158 = vld.sshfl [vmem:[#allocation1] sm:$0xff pattern:$0x75316420]
        %v159 = vld.sshfl [vmem:[#allocation1 + $0x8] sm:$0xff pattern:$0x75316420]
        %vm162 = vcmask 1043456
        %v163 = vsel %vm162, %v158, -inf
        %v164 = vrot.slane %v163, 4
        %v165 = vmax.f32 %v163, %v164
        %v166 = vrot.slane %v165, 2
        %v167 = vmax.f32 %v165, %v166
        %v168 = vrot.slane %v167, 1
        %v169 = vmax.f32 %v167, %v168
        %v170 = vsel %vm162, %v159, -inf
        %v171 = vrot.slane %v170, 4
        %v172 = vmax.f32 %v170, %v171
        %v173 = vrot.slane %v172, 2
        %v174 = vmax.f32 %v172, %v173
        %v175 = vrot.slane %v174, 1
        %v176 = vmax.f32 %v174, %v175
        %177 = vst [vmem:[#allocation1] ss:$2 sm:$0xff] %v155
        %v178 = vld.sshfl [vmem:[#allocation1] sm:$0xff pattern:$0x75316420]
        %v179 = vld.sshfl [vmem:[#allocation1 + $0x8] sm:$0xff pattern:$0x75316420]
        %v182 = vsel %vm162, %v178, 0.0
        %v183 = vrot.slane %v182, 4
        %v184 = vadd.f32 %v182, %v183
        %v185 = vrot.slane %v184, 2
        %v186 = vadd.f32 %v184, %v185
        %v187 = vrot.slane %v186, 1
        %v188 = vadd.f32 %v186, %v187
        %v189 = vsel %vm162, %v179, 0.0
        %v190 = vrot.slane %v189, 4
        %v191 = vadd.f32 %v189, %v190
        %v192 = vrot.slane %v191, 2
        %v193 = vadd.f32 %v191, %v192
        %v194 = vrot.slane %v193, 1
        %v195 = vadd.f32 %v193, %v194
        %v198 = vrot.slane %v176, 7
        %vm199 = vcmask 1040384
        %v200 = vsel %vm199, %v169, %v198
        %v202 = vlaneseq
        %vm203 = vcmp.ge.s32.totalorder %v202, 0
        %vm204 = vcmp.lt.s32.totalorder %v202, 256
        %vm205 = vmand %vm203, %vm204
        %206 = vst.msk [vmem:[%s152] ss:$2 sm:$0x3] %vm205, %v200
        %v207 = vmul.f32 %v188, 0.25
        %v208 = vmul.f32 %v195, 0.25
        %v211 = vrot.slane %v208, 7
        %v212 = vsel %vm199, %v207, %v211
        %s214 = scalar_lea.vmem %s152, 1 [#allocation5]
        %215 = vst.msk [vmem:[%s214] ss:$2 sm:$0x3] %vm205, %v212
        %s216 = sand.u32 %s68, 1
        %s217 = scalar_lea.sflag [#allocation4], %s216
        %s218 = sand.u32 %s68, 1
        %s219 = smul.addr %s218, 4
        %s220 = scalar_lea.vmem [#allocation5], %s219
        // Predicated region
        $region29: #{tpu_custom_call.1} parent=23 // pred_check
          %p221 = pneg %p78
        $region30: #{tpu_custom_call.1} parent=23 // pred_check_branch
          %223 = sbr.rel (%p221) target = $region32
        $region31: #{tpu_custom_call.1} parent=23 // pred_region
          %s224 = smul.u32 2, %s23
          %226 = vsyncadd %s217, 0
          %s227 = smul.addr %s22, 2
          %s228 = sadd.s32 %s224, %s227
          %s229 = smul.addr %s228, 2
          %s230 = scalar_lea.hbm %s1, %s229
          %s232 = sshll.u32 %s220, 4
          %s233 = int_to_ptr.vmem [resolvable:$true] %s232
          %s234 = sshll.u32 %s230, 4
          %s235 = int_to_ptr.hbm [resolvable:$true] %s234
          %237 = dma.vmem_to_hbm [thread:$0]  %s233, 64, %s235, %s217
        $region32: #{tpu_custom_call.1} parent=23 // pred_fallthru
          _
      $region24: #{tpu_custom_call.1} parent=5 // pred_fallthru
        _
      %p238 = scmp.le.s32.totalorder 2, %s13
      // Predicated region
      $region33: #{tpu_custom_call.1} parent=5 // pred_check
        %p239 = pneg %p238
      $region34: #{tpu_custom_call.1} parent=5 // pred_check_branch
        %241 = sbr.rel (%p239) target = $region36
      $region35: #{tpu_custom_call.1} parent=5 // pred_region
        %s242 = ssub.s32 %s13, 2
        // Predicated region
        $region37: #{tpu_custom_call.1} parent=35 // pred_check
          %p243 = pneg %p84
        $region38: #{tpu_custom_call.1} parent=35 // pred_check_branch
          %245 = sbr.rel (%p243) target = $region40
        $region39: #{tpu_custom_call.1} parent=35 // pred_region
          %s246 = sand.u32 %s69, 1
          %s247 = scalar_lea.sflag [#allocation4], %s246
          %s248 = sand.u32 %s69, 1
          %s249 = smul.addr %s248, 4
          %s250 = scalar_lea.vmem [#allocation5], %s249
          %252 = dma.done %s247, 64
        $region40: #{tpu_custom_call.1} parent=35 // pred_fallthru
          _
      $region36: #{tpu_custom_call.1} parent=5 // pred_fallthru
        _
    $region6: #{tpu_custom_call.1} parent=1 // loop_footer
      %s17 = sadd.s32 1, %s13
    $region7: #{tpu_custom_call.1} parent=1 // loop_footer_branch
      %12 = sbr.rel target = $region3
    $region8: #{tpu_custom_call.1} parent=1 // loop_exit
      _
    %253 = vsyncpa [#allocation3], 1
    %s254 = scalar_lea.sflag [#allocation3], 1
    %255 = vsyncpa %s254, 1
    %256 = vsyncpa [#allocation4], 1
    %s257 = scalar_lea.sflag [#allocation4], 1
    %258 = vsyncpa %s257, 1

</llo_original>
